<compile_context>
chip_gen: v5e
topology: v5e:2x2
jax: 0.10.0
libtpu: 0.0.40
codegen_flags: <defaults>
</compile_context>

<pallas_src>
import jax
import jax.numpy as jnp
from jax.experimental import pallas as pl
from jax.experimental.pallas import tpu as pltpu

COUT_PAD = 128   # stem channels padded to a full lane width
NC_PAD = 128     # num_classes padded to a full lane width
BN_EPS = 1e-5


def _pick_tile_rows(hw, max_rows=2048):
    """Largest power-of-two row tile (<= max_rows) dividing H*W; else the full extent."""
    for t in (4096, 2048, 1024, 512, 256, 128, 64, 32, 16, 8):
        if t <= max_rows and hw % t == 0:
            return t
    return hw  # equals full dim -> still a legal block shape


def _make_fused_kernel(n_batch, hw):
    inv_total = 1.0 / float(n_batch * hw)   # 1 / (N*H*W) for batch statistics
    inv_hw = 1.0 / float(hw)                # 1 / (H*W)   for global average pool

    def kernel(patches_ref, w_ref, gamma_ref, beta_ref, fcw_ref, fcb_ref,
               out_ref, sumsq_sc, spsum_sc):
        n = pl.program_id(0)   # image index
        t = pl.program_id(1)   # row-tile index within the image

        @pl.when((n == 0) & (t == 0))
        def _init():
            sumsq_sc[...] = jnp.zeros_like(sumsq_sc)
            spsum_sc[...] = jnp.zeros_like(spsum_sc)

        # 3x3 conv as bf16 im2col matmul on the MXU, f32 accumulation.
        y = jnp.dot(patches_ref[0], w_ref[...],
                    preferred_element_type=jnp.float32)          # (TILE, COUT_PAD)

        tile_sum = jnp.sum(y, axis=0, keepdims=True)             # (1, COUT_PAD)
        sumsq_sc[...] += jnp.sum(y * y, axis=0, keepdims=True)   # global E[y^2] numerator

        # Accumulate this image's spatial sum (one-hot over the batch row; avoids
        # dynamic VMEM addressing -> lowers cleanly on all TPU generations).
        row_ids = jax.lax.broadcasted_iota(jnp.int32, spsum_sc.shape, 0)
        spsum_sc[...] += jnp.where(row_ids == n, tile_sum, 0.0)

        @pl.when((n == pl.num_programs(0) - 1) & (t == pl.num_programs(1) - 1))
        def _finalize():
            sp_sum = spsum_sc[...]                                # (N, COUT_PAD)
            ch_sum = jnp.sum(sp_sum, axis=0, keepdims=True)       # (1, COUT_PAD)
            mean = ch_sum * inv_total
            var = sumsq_sc[...] * inv_total - mean * mean         # biased var (train mode)
            scale = gamma_ref[...] * jax.lax.rsqrt(var + BN_EPS)  # (1, COUT_PAD)
            shift = beta_ref[...] - mean * scale
            # BN + global average pool, fused (both are linear in y):
            pooled = sp_sum * inv_hw * scale + shift              # (N, COUT_PAD)
            out_ref[...] = (
                jnp.dot(pooled, fcw_ref[...], preferred_element_type=jnp.float32)
                + fcb_ref[...]
            )

    return kernel


@jax.jit
def network_forward(x_nchw, params):
    """s0 = s1 = stem(x); out = s1.mean(3).mean(2); logits = Linear(out)."""
    x = jnp.asarray(x_nchw, jnp.float32)
    n, cin, h, w = x.shape
    conv_w = params["conv_w"]                       # (Cout, Cin, 3, 3)
    cout = conv_w.shape[0]
    num_classes = params["fc_w"].shape[0]
    hw = h * w
    k = 9 * cin

    # --- im2col in XLA, emitted in bf16 (halves the HBM bytes the kernel reads) ---
    x_nhwc = jnp.transpose(x, (0, 2, 3, 1)).astype(jnp.bfloat16)
    xp = jnp.pad(x_nhwc, ((0, 0), (1, 1), (1, 1), (0, 0)))
    cols = [xp[:, kh:kh + h, kw:kw + w, :] for kh in range(3) for kw in range(3)]
    patches = jnp.concatenate(cols, axis=-1).reshape(n, hw, k)    # (N, H*W, 9*Cin) bf16

    # --- lane-pad the tiny channel dims to full 128-lane width (zeros -> exact) ---
    w_mat = jnp.transpose(conv_w, (2, 3, 1, 0)).reshape(k, cout)  # matches patch order
    w_mat = jnp.pad(w_mat, ((0, 0), (0, COUT_PAD - cout))).astype(jnp.bfloat16)
    gamma = jnp.pad(params["bn_gamma"], (0, COUT_PAD - cout)).reshape(1, COUT_PAD)
    beta = jnp.pad(params["bn_beta"], (0, COUT_PAD - cout)).reshape(1, COUT_PAD)
    fc_w = jnp.pad(jnp.transpose(params["fc_w"]),
                   ((0, COUT_PAD - cout), (0, NC_PAD - num_classes))).astype(jnp.float32)
    fc_b = jnp.pad(params["fc_b"], (0, NC_PAD - num_classes)).reshape(1, NC_PAD)

    tile_rows = _pick_tile_rows(hw)
    grid = (n, hw // tile_rows)
    kernel = _make_fused_kernel(n, hw)

    logits_pad = pl.pallas_call(
        kernel,
        out_shape=jax.ShapeDtypeStruct((n, NC_PAD), jnp.float32),
        grid_spec=pltpu.PrefetchScalarGridSpec(
            num_scalar_prefetch=0,
            grid=grid,
            in_specs=[
                pl.BlockSpec((1, tile_rows, k), lambda i, t: (i, t, 0)),   # patches
                pl.BlockSpec((k, COUT_PAD), lambda i, t: (0, 0)),          # conv weight
                pl.BlockSpec((1, COUT_PAD), lambda i, t: (0, 0)),          # bn gamma
                pl.BlockSpec((1, COUT_PAD), lambda i, t: (0, 0)),          # bn beta
                pl.BlockSpec((COUT_PAD, NC_PAD), lambda i, t: (0, 0)),     # fc weight^T
                pl.BlockSpec((1, NC_PAD), lambda i, t: (0, 0)),            # fc bias
            ],
            out_specs=pl.BlockSpec((n, NC_PAD), lambda i, t: (0, 0)),
            scratch_shapes=[
                pltpu.VMEM((1, COUT_PAD), jnp.float32),   # per-channel sum of squares
                pltpu.VMEM((n, COUT_PAD), jnp.float32),   # per-image spatial sums
            ],
        ),
        compiler_params=pltpu.CompilerParams(
            # Both axes feed the resident accumulators / constant output block,
            # so both must be "arbitrary" (fusion chosen over megacore sharding).
            dimension_semantics=("arbitrary", "arbitrary"),
            vmem_limit_bytes=32 * 1024 * 1024,
        ),
    )(patches, w_mat, gamma, beta, fc_w, fc_b)

    return logits_pad[:, :num_classes]


def init_network_params(key, C=4, num_classes=10, layers=0, stem_multiplier=3):
    """Deterministic parameter init mirroring the module's __init__ shapes."""
    assert layers == 0, "Cell is not defined in the provided source; see TODO(synk)."
    C_curr = stem_multiplier * C          # stem output channels
    C_prev = C_curr                       # with layers=0, classifier input = C_curr
    k_conv, k_w, k_b = jax.random.split(key, 3)

    fan_in_conv = 3 * 3 * 3
    conv_w = jax.random.normal(k_conv, (C_curr, 3, 3, 3), jnp.float32) * jnp.sqrt(
        2.0 / fan_in_conv
    )
    bn_gamma = jnp.ones((C_curr,), jnp.float32)   # PyTorch BN default weight=1
    bn_beta = jnp.zeros((C_curr,), jnp.float32)   # PyTorch BN default bias=0

    bound = 1.0 / jnp.sqrt(jnp.float32(C_prev))
    fc_w = jax.random.uniform(k_w, (num_classes, C_prev), jnp.float32, -bound, bound)
    fc_b = jax.random.uniform(k_b, (num_classes,), jnp.float32, -bound, bound)
    return dict(conv_w=conv_w, bn_gamma=bn_gamma, bn_beta=bn_beta, fc_w=fc_w, fc_b=fc_b)


if __name__ == "__main__":
    key = jax.random.PRNGKey(0)
    k_x, k_p = jax.random.split(key)

    # Small, module-consistent shapes: batch=2, 3 input channels (stem conv expects 3),
    # 16x16 spatial, C=4, stem_multiplier=3 -> stem channels 12, num_classes=10.
    x = jax.random.normal(k_x, (2, 3, 16, 16), jnp.float32)
    params = init_network_params(k_p, C=4, num_classes=10, layers=0, stem_multiplier=3)

    logits = network_forward(x, params)
    jax.block_until_ready(logits)
    assert logits.shape == (2, 10) and logits.dtype == jnp.float32
    assert bool(jnp.all(jnp.isfinite(logits)))
    print("KERNEL_OK")
</pallas_src>

<mosaic_0001>
module attributes {stable_mosaic.version = 11 : i64} {
  func.func @kernel(%arg0: i32, %arg1: i32, %arg2: memref<1x256x27xbf16, #tpu.memory_space<vmem>>, %arg3: memref<27x128xbf16, #tpu.memory_space<vmem>>, %arg4: memref<1x128xf32, #tpu.memory_space<vmem>>, %arg5: memref<1x128xf32, #tpu.memory_space<vmem>>, %arg6: memref<128x128xf32, #tpu.memory_space<vmem>>, %arg7: memref<1x128xf32, #tpu.memory_space<vmem>>, %arg8: memref<2x128xf32, #tpu.memory_space<vmem>>, %arg9: memref<1x128xf32, #tpu.memory_space<vmem>>, %arg10: memref<2x128xf32, #tpu.memory_space<vmem>>) attributes {dimension_semantics = [#tpu.dimension_semantics<arbitrary>, #tpu.dimension_semantics<arbitrary>], iteration_bounds = array<i64: 2, 1>, scalar_prefetch = 0 : i64, scratch_operands = 2 : i64, tpu.core_type = #tpu.core_type<tc>, window_params = [{transform_indices = @transform_0, window_bounds = array<i64: 1, 256, 27>}, {pipeline_mode = #tpu.pipeline_mode<synchronous>, transform_indices = @transform_1, window_bounds = array<i64: 27, 128>}, {pipeline_mode = #tpu.pipeline_mode<synchronous>, transform_indices = @transform_2, window_bounds = array<i64: 1, 128>}, {pipeline_mode = #tpu.pipeline_mode<synchronous>, transform_indices = @transform_3, window_bounds = array<i64: 1, 128>}, {pipeline_mode = #tpu.pipeline_mode<synchronous>, transform_indices = @transform_4, window_bounds = array<i64: 128, 128>}, {pipeline_mode = #tpu.pipeline_mode<synchronous>, transform_indices = @transform_5, window_bounds = array<i64: 1, 128>}, {pipeline_mode = #tpu.pipeline_mode<synchronous>, transform_indices = @transform_6, window_bounds = array<i64: 2, 128>}]} {
    %c0_i32 = arith.constant 0 : i32
    %0 = arith.cmpi eq, %arg0, %c0_i32 : i32
    %c0_i32_0 = arith.constant 0 : i32
    %1 = arith.cmpi eq, %arg1, %c0_i32_0 : i32
    %2 = arith.andi %0, %1 : i1
    %3 = arith.extui %2 : i1 to i32
    %c0_i32_1 = arith.constant 0 : i32
    %4 = arith.cmpi ne, %3, %c0_i32_1 : i32
    scf.if %4 {
      %cst_19 = arith.constant 0.000000e+00 : f32
      %32 = vector.broadcast %cst_19 : f32 to vector<1x128xf32>
      %c0_20 = arith.constant 0 : index
      %c0_21 = arith.constant 0 : index
      %33 = vector.load %arg9[%c0_20, %c0_21] : memref<1x128xf32, #tpu.memory_space<vmem>>, vector<1x128xf32>
      tpu.vector_store %arg9[%c0_20, %c0_21], %32 {strides = array<i32>} : memref<1x128xf32, #tpu.memory_space<vmem>>, vector<1x128xf32>,
      %cst_22 = arith.constant 0.000000e+00 : f32
      %34 = vector.broadcast %cst_22 : f32 to vector<2x128xf32>
      %c0_23 = arith.constant 0 : index
      %c0_24 = arith.constant 0 : index
      %35 = vector.load %arg10[%c0_23, %c0_24] : memref<2x128xf32, #tpu.memory_space<vmem>>, vector<2x128xf32>
      tpu.vector_store %arg10[%c0_23, %c0_24], %34 {strides = array<i32>} : memref<2x128xf32, #tpu.memory_space<vmem>>, vector<2x128xf32>,
    } else {
    }
    %c0 = arith.constant 0 : index
    %c0_2 = arith.constant 0 : index
    %c0_3 = arith.constant 0 : index
    %5 = vector.load %arg2[%c0, %c0_2, %c0_3] : memref<1x256x27xbf16, #tpu.memory_space<vmem>>, vector<1x256x27xbf16>
    %6 = vector.shape_cast %5 : vector<1x256x27xbf16> to vector<256x27xbf16>
    %c0_4 = arith.constant 0 : index
    %c0_5 = arith.constant 0 : index
    %7 = vector.load %arg3[%c0_4, %c0_5] : memref<27x128xbf16, #tpu.memory_space<vmem>>, vector<27x128xbf16>
    %cst = arith.constant dense<0.000000e+00> : vector<256x128xf32>
    %8 = tpu.matmul %6, %7, %cst {dimension_numbers = #tpu.dot_dimension_numbers<[1], [0], [0], [1], [0, 0, 1, 1], [], []>} : vector<256x27xbf16>, vector<27x128xbf16>, vector<256x128xf32> -> vector<256x128xf32>
    %cst_6 = arith.constant dense<0.000000e+00> : vector<128xf32>
    %9 = vector.multi_reduction <add>, %8, %cst_6 [0] : vector<256x128xf32> to vector<128xf32>
    %10 = vector.shape_cast %9 : vector<128xf32> to vector<1x128xf32>
    %c0_7 = arith.constant 0 : index
    %c0_8 = arith.constant 0 : index
    %11 = vector.load %arg9[%c0_7, %c0_8] : memref<1x128xf32, #tpu.memory_space<vmem>>, vector<1x128xf32>
    %12 = arith.mulf %8, %8 : vector<256x128xf32>
    %cst_9 = arith.constant dense<0.000000e+00> : vector<128xf32>
    %13 = vector.multi_reduction <add>, %12, %cst_9 [0] : vector<256x128xf32> to vector<128xf32>
    %14 = vector.shape_cast %13 : vector<128xf32> to vector<1x128xf32>
    %15 = arith.addf %11, %14 : vector<1x128xf32>
    %c0_10 = arith.constant 0 : index
    %c0_11 = arith.constant 0 : index
    %16 = vector.load %arg9[%c0_10, %c0_11] : memref<1x128xf32, #tpu.memory_space<vmem>>, vector<1x128xf32>
    tpu.vector_store %arg9[%c0_10, %c0_11], %15 {strides = array<i32>} : memref<1x128xf32, #tpu.memory_space<vmem>>, vector<1x128xf32>,
    %17 = tpu.iota {dimensions = array<i32: 0>} : vector<2x128xi32>
    %c0_12 = arith.constant 0 : index
    %c0_13 = arith.constant 0 : index
    %18 = vector.load %arg10[%c0_12, %c0_13] : memref<2x128xf32, #tpu.memory_space<vmem>>, vector<2x128xf32>
    %19 = vector.broadcast %arg0 : i32 to vector<2x128xi32>
    %20 = arith.cmpi eq, %17, %19 : vector<2x128xi32>
    %cst_14 = arith.constant 0.000000e+00 : f32
    %21 = vector.shape_cast %10 : vector<1x128xf32> to vector<1x128xf32>
    %22 = vector.broadcast %21 : vector<1x128xf32> to vector<2x128xf32>
    %23 = vector.broadcast %cst_14 : f32 to vector<2x128xf32>
    %24 = arith.select %20, %22, %23 : vector<2x128xi1>, vector<2x128xf32>
    %25 = arith.addf %18, %24 : vector<2x128xf32>
    %c0_15 = arith.constant 0 : index
    %c0_16 = arith.constant 0 : index
    %26 = vector.load %arg10[%c0_15, %c0_16] : memref<2x128xf32, #tpu.memory_space<vmem>>, vector<2x128xf32>
    tpu.vector_store %arg10[%c0_15, %c0_16], %25 {strides = array<i32>} : memref<2x128xf32, #tpu.memory_space<vmem>>, vector<2x128xf32>,
    %c1_i32 = arith.constant 1 : i32
    %27 = arith.cmpi eq, %arg0, %c1_i32 : i32
    %c0_i32_17 = arith.constant 0 : i32
    %28 = arith.cmpi eq, %arg1, %c0_i32_17 : i32
    %29 = arith.andi %27, %28 : i1
    %30 = arith.extui %29 : i1 to i32
    %c0_i32_18 = arith.constant 0 : i32
    %31 = arith.cmpi ne, %30, %c0_i32_18 : i32
    scf.if %31 {
      %c0_19 = arith.constant 0 : index
      %c0_20 = arith.constant 0 : index
      %32 = vector.load %arg10[%c0_19, %c0_20] : memref<2x128xf32, #tpu.memory_space<vmem>>, vector<2x128xf32>
      %cst_21 = arith.constant dense<0.000000e+00> : vector<128xf32>
      %33 = vector.multi_reduction <add>, %32, %cst_21 [0] : vector<2x128xf32> to vector<128xf32>
      %34 = vector.shape_cast %33 : vector<128xf32> to vector<1x128xf32>
      %cst_22 = arith.constant 0.001953125 : f32
      %35 = vector.broadcast %cst_22 : f32 to vector<1x128xf32>
      %36 = arith.mulf %34, %35 : vector<1x128xf32>
      %c0_23 = arith.constant 0 : index
      %c0_24 = arith.constant 0 : index
      %37 = vector.load %arg9[%c0_23, %c0_24] : memref<1x128xf32, #tpu.memory_space<vmem>>, vector<1x128xf32>
      %cst_25 = arith.constant 0.001953125 : f32
      %38 = vector.broadcast %cst_25 : f32 to vector<1x128xf32>
      %39 = arith.mulf %37, %38 : vector<1x128xf32>
      %40 = arith.mulf %36, %36 : vector<1x128xf32>
      %41 = arith.subf %39, %40 : vector<1x128xf32>
      %c0_26 = arith.constant 0 : index
      %c0_27 = arith.constant 0 : index
      %42 = vector.load %arg4[%c0_26, %c0_27] : memref<1x128xf32, #tpu.memory_space<vmem>>, vector<1x128xf32>
      %cst_28 = arith.constant 9.99999974E-6 : f32
      %43 = vector.broadcast %cst_28 : f32 to vector<1x128xf32>
      %44 = arith.addf %41, %43 : vector<1x128xf32>
      %45 = math.rsqrt %44 : vector<1x128xf32>
      %46 = arith.mulf %42, %45 : vector<1x128xf32>
      %c0_29 = arith.constant 0 : index
      %c0_30 = arith.constant 0 : index
      %47 = vector.load %arg5[%c0_29, %c0_30] : memref<1x128xf32, #tpu.memory_space<vmem>>, vector<1x128xf32>
      %48 = arith.mulf %36, %46 : vector<1x128xf32>
      %49 = arith.subf %47, %48 : vector<1x128xf32>
      %cst_31 = arith.constant 3.906250e-03 : f32
      %50 = vector.broadcast %cst_31 : f32 to vector<2x128xf32>
      %51 = arith.mulf %32, %50 : vector<2x128xf32>
      %52 = vector.broadcast %46 : vector<1x128xf32> to vector<2x128xf32>
      %53 = arith.mulf %51, %52 : vector<2x128xf32>
      %54 = vector.broadcast %49 : vector<1x128xf32> to vector<2x128xf32>
      %55 = arith.addf %53, %54 : vector<2x128xf32>
      %c0_32 = arith.constant 0 : index
      %c0_33 = arith.constant 0 : index
      %56 = vector.load %arg6[%c0_32, %c0_33] : memref<128x128xf32, #tpu.memory_space<vmem>>, vector<128x128xf32>
      %cst_34 = arith.constant dense<0.000000e+00> : vector<2x128xf32>
      %57 = tpu.matmul %55, %56, %cst_34 {dimension_numbers = #tpu.dot_dimension_numbers<[1], [0], [0], [1], [0, 0, 1, 1], [], []>} : vector<2x128xf32>, vector<128x128xf32>, vector<2x128xf32> -> vector<2x128xf32>
      %c0_35 = arith.constant 0 : index
      %c0_36 = arith.constant 0 : index
      %58 = vector.load %arg7[%c0_35, %c0_36] : memref<1x128xf32, #tpu.memory_space<vmem>>, vector<1x128xf32>
      %59 = vector.broadcast %58 : vector<1x128xf32> to vector<2x128xf32>
      %60 = arith.addf %57, %59 : vector<2x128xf32>
      %c0_37 = arith.constant 0 : index
      %c0_38 = arith.constant 0 : index
      %61 = vector.load %arg8[%c0_37, %c0_38] : memref<2x128xf32, #tpu.memory_space<vmem>>, vector<2x128xf32>
      tpu.vector_store %arg8[%c0_37, %c0_38], %60 {strides = array<i32>} : memref<2x128xf32, #tpu.memory_space<vmem>>, vector<2x128xf32>,
    } else {
    }
    return
  }
  func.func @transform_0(%arg0: i32, %arg1: i32) -> (i32, i32, i32) {
    %c0_i32 = arith.constant 0 : i32
    %c0_i32_0 = arith.constant 0 : i32
    return %arg0, %arg1, %c0_i32 : i32, i32, i32
  }
  func.func @transform_1(%arg0: i32, %arg1: i32) -> (i32, i32) {
    %c0_i32 = arith.constant 0 : i32
    %c0_i32_0 = arith.constant 0 : i32
    %c0_i32_1 = arith.constant 0 : i32
    return %c0_i32, %c0_i32_0 : i32, i32
  }
  func.func @transform_2(%arg0: i32, %arg1: i32) -> (i32, i32) {
    %c0_i32 = arith.constant 0 : i32
    %c0_i32_0 = arith.constant 0 : i32
    %c0_i32_1 = arith.constant 0 : i32
    return %c0_i32, %c0_i32_0 : i32, i32
  }
  func.func @transform_3(%arg0: i32, %arg1: i32) -> (i32, i32) {
    %c0_i32 = arith.constant 0 : i32
    %c0_i32_0 = arith.constant 0 : i32
    %c0_i32_1 = arith.constant 0 : i32
    return %c0_i32, %c0_i32_0 : i32, i32
  }
  func.func @transform_4(%arg0: i32, %arg1: i32) -> (i32, i32) {
    %c0_i32 = arith.constant 0 : i32
    %c0_i32_0 = arith.constant 0 : i32
    %c0_i32_1 = arith.constant 0 : i32
    return %c0_i32, %c0_i32_0 : i32, i32
  }
  func.func @transform_5(%arg0: i32, %arg1: i32) -> (i32, i32) {
    %c0_i32 = arith.constant 0 : i32
    %c0_i32_0 = arith.constant 0 : i32
    %c0_i32_1 = arith.constant 0 : i32
    return %c0_i32, %c0_i32_0 : i32, i32
  }
  func.func @transform_6(%arg0: i32, %arg1: i32) -> (i32, i32) {
    %c0_i32 = arith.constant 0 : i32
    %c0_i32_0 = arith.constant 0 : i32
    %c0_i32_1 = arith.constant 0 : i32
    return %c0_i32, %c0_i32_0 : i32, i32
  }
}

</mosaic_0001>

<llo_original>
// kernel: network_forward.1
$region0: #{network_forward.1}
  #allocation0 [shape = 'u32[]', space=smem, size = 0x4, offset = 0x4, fixed_abs, tag = 'smem constant byte address 0x4 - core index']
  #allocation1 [shape = 'u32[72,128]{1,0:T(1,128)}', space=vmem, size = 0x9000, scoped, tag = 'internal scratch']
  #allocation2 [shape = 'f32[1,128]{1,0:T(1,128)}', space=vmem, size = 0x200, scoped, tag = 'scratch operand']
  #allocation3 [shape = 'f32[2,128]{1,0:T(2,128)}', space=vmem, size = 0x400, scoped, tag = 'scratch operand']
  %s0 = inlined_call_operand.vmem [shape: bf16[2,256,27], index: 0, kind: input, shape index: {}]
  %s1 = inlined_call_operand.vmem [shape: bf16[27,128], index: 1, kind: input, shape index: {}]
  %s2 = inlined_call_operand.vmem [shape: f32[1,128], index: 2, kind: input, shape index: {}]
  %s3 = inlined_call_operand.vmem [shape: f32[1,128], index: 3, kind: input, shape index: {}]
  %s4 = inlined_call_operand.vmem [shape: f32[128,128], index: 4, kind: input, shape index: {}]
  %s5 = inlined_call_operand.vmem [shape: f32[1,128], index: 5, kind: input, shape index: {}]
  %s6 = inlined_call_operand.hbm [shape: f32[2,128], index: 6, kind: output, shape index: {}]
  %s7 = sld [smem:[#allocation0]]
  $region65: #{network_forward.1} parent=0
    _
  %s9 = ssub.s32 1, %s7
  %s10 = scalar_select 0, %s9, %s7
  $region1: #{network_forward.1} parent=0
    #allocation4 [shape = 'u8[1024]{0}', space=vmem, size = 0x400, scoped, tag = 'output window, operand 0, single buffered']
    #allocation5 [shape = 's32[2]{0}', space=sflag, size = 0x8, scoped, tag = 'scoped memory for network_forward.1']
    %11 = vsyncpa [#allocation5], 0
    loop: start=0, step=1, limit=4
    $region2: #{network_forward.1} parent=1 // loop_pre_header
      _
    $region3: #{network_forward.1} parent=1 // loop_header
      %s13 = sphi 0, %s17
      %p14 = scmp.ge.s32.totalorder %s13, 4
      %s20 = sphi 0, %s32
      %s21 = sphi 0, %s28
      %s22 = sphi 0, %s20
      %s23 = sphi 0, %s21
      %s24 = sphi 0, %s22
      %s25 = sphi 0, %s23
      %s37 = sphi 0, %s39
      %s40 = sphi 0, %s37
      %s41 = sphi 0, %s40
      %s57 = sphi 0, %s41
      %s61 = sphi 0, %s61
      %s63 = sphi 0, %s61
      %s64 = sphi 0, %s63
      %s78 = sphi 0, %s64
      %s82 = sphi 0, %s82
      %s84 = sphi 0, %s82
      %s85 = sphi 0, %s84
      %s99 = sphi 0, %s85
      %s103 = sphi 0, %s103
      %s105 = sphi 0, %s103
      %s106 = sphi 0, %s105
      %s120 = sphi 0, %s106
      %s124 = sphi 0, %s124
      %s126 = sphi 0, %s124
      %s127 = sphi 0, %s126
      %s141 = sphi 0, %s127
      %s145 = sphi 0, %s145
      %s147 = sphi 0, %s145
      %s148 = sphi 0, %s147
      %s162 = sphi 0, %s148
      %s166 = sphi 0, %s166
      %s168 = sphi 0, %s166
      %s169 = sphi 0, %s168
      %s183 = sphi 0, %s169
    $region4: #{network_forward.1} parent=1 // loop_header_branch
      %16 = sbr.rel (%p14) target = $region8
    $region5: #{network_forward.1} parent=1 // loop_body
      %s18 = ssub.s32 %s13, 1
      %s19 = ssub.s32 %s13, 2
      %s26 = sadd.s32 1, %s21
      %p27 = scmp.ge.s32.totalorder %s26, 1
      %s28 = scalar_select %p27, 0, %s26
      %s29 = sadd.s32 1, %s20
      %s30 = scalar_select %p27, %s29, %s20
      %p31 = scmp.ge.s32.totalorder %s30, 2
      %s32 = scalar_select %p31, 0, %s30
      %s33 = ssub.s32 %s20, %s32
      %s34 = ssub.s32 %s21, %s28
      %s35 = sor.u32 %s33, %s34
      %p36 = scmp.eq.s32.totalorder %s35, 0
      %s38 = sadd.s32 %s37, 1
      %s39 = scalar_select %p36, %s37, %s38
      %p42 = pneg %p36
      %p43 = scmp.eq.s32.totalorder %s13, 1
      %p44 = por %p42, %p43
      %p45 = scmp.ne.s32.totalorder %s37, %s40
      %p46 = scmp.eq.s32.totalorder %s13, 0
      %p47 = por %p45, %p46
      %p48 = scmp.ne.s32.totalorder %s37, %s40
      %p49 = scmp.eq.s32.totalorder %s18, 1
      %p50 = por %p48, %p49
      %p51 = scmp.ne.s32.totalorder %s40, %s41
      %p52 = scmp.eq.s32.totalorder %s18, 0
      %p53 = por %p51, %p52
      %p54 = scmp.ne.s32.totalorder %s40, %s41
      %p55 = scmp.eq.s32.totalorder %s19, 1
      %p56 = por %p54, %p55
      %p58 = scmp.ne.s32.totalorder %s41, %s57
      %p59 = scmp.eq.s32.totalorder %s19, 0
      %p60 = por %p58, %p59
      %s62 = sadd.s32 %s61, 1
      %p65 = scmp.eq.s32.totalorder %s13, 1
      %p66 = scmp.ne.s32.totalorder %s61, %s63
      %p67 = scmp.eq.s32.totalorder %s13, 0
      %p68 = por %p66, %p67
      %p69 = scmp.ne.s32.totalorder %s61, %s63
      %p70 = scmp.eq.s32.totalorder %s18, 1
      %p71 = por %p69, %p70
      %p72 = scmp.ne.s32.totalorder %s63, %s64
      %p73 = scmp.eq.s32.totalorder %s18, 0
      %p74 = por %p72, %p73
      %p75 = scmp.ne.s32.totalorder %s63, %s64
      %p76 = scmp.eq.s32.totalorder %s19, 1
      %p77 = por %p75, %p76
      %p79 = scmp.ne.s32.totalorder %s64, %s78
      %p80 = scmp.eq.s32.totalorder %s19, 0
      %p81 = por %p79, %p80
      %s83 = sadd.s32 %s82, 1
      %p86 = scmp.eq.s32.totalorder %s13, 1
      %p87 = scmp.ne.s32.totalorder %s82, %s84
      %p88 = scmp.eq.s32.totalorder %s13, 0
      %p89 = por %p87, %p88
      %p90 = scmp.ne.s32.totalorder %s82, %s84
      %p91 = scmp.eq.s32.totalorder %s18, 1
      %p92 = por %p90, %p91
      %p93 = scmp.ne.s32.totalorder %s84, %s85
      %p94 = scmp.eq.s32.totalorder %s18, 0
      %p95 = por %p93, %p94
      %p96 = scmp.ne.s32.totalorder %s84, %s85
      %p97 = scmp.eq.s32.totalorder %s19, 1
      %p98 = por %p96, %p97
      %p100 = scmp.ne.s32.totalorder %s85, %s99
      %p101 = scmp.eq.s32.totalorder %s19, 0
      %p102 = por %p100, %p101
      %s104 = sadd.s32 %s103, 1
      %p107 = scmp.eq.s32.totalorder %s13, 1
      %p108 = scmp.ne.s32.totalorder %s103, %s105
      %p109 = scmp.eq.s32.totalorder %s13, 0
      %p110 = por %p108, %p109
      %p111 = scmp.ne.s32.totalorder %s103, %s105
      %p112 = scmp.eq.s32.totalorder %s18, 1
      %p113 = por %p111, %p112
      %p114 = scmp.ne.s32.totalorder %s105, %s106
      %p115 = scmp.eq.s32.totalorder %s18, 0
      %p116 = por %p114, %p115
      %p117 = scmp.ne.s32.totalorder %s105, %s106
      %p118 = scmp.eq.s32.totalorder %s19, 1
      %p119 = por %p117, %p118
      %p121 = scmp.ne.s32.totalorder %s106, %s120
      %p122 = scmp.eq.s32.totalorder %s19, 0
      %p123 = por %p121, %p122
      %s125 = sadd.s32 %s124, 1
      %p128 = scmp.eq.s32.totalorder %s13, 1
      %p129 = scmp.ne.s32.totalorder %s124, %s126
      %p130 = scmp.eq.s32.totalorder %s13, 0
      %p131 = por %p129, %p130
      %p132 = scmp.ne.s32.totalorder %s124, %s126
      %p133 = scmp.eq.s32.totalorder %s18, 1
      %p134 = por %p132, %p133
      %p135 = scmp.ne.s32.totalorder %s126, %s127
      %p136 = scmp.eq.s32.totalorder %s18, 0
      %p137 = por %p135, %p136
      %p138 = scmp.ne.s32.totalorder %s126, %s127
      %p139 = scmp.eq.s32.totalorder %s19, 1
      %p140 = por %p138, %p139
      %p142 = scmp.ne.s32.totalorder %s127, %s141
      %p143 = scmp.eq.s32.totalorder %s19, 0
      %p144 = por %p142, %p143
      %s146 = sadd.s32 %s145, 1
      %p149 = scmp.eq.s32.totalorder %s13, 1
      %p150 = scmp.ne.s32.totalorder %s145, %s147
      %p151 = scmp.eq.s32.totalorder %s13, 0
      %p152 = por %p150, %p151
      %p153 = scmp.ne.s32.totalorder %s145, %s147
      %p154 = scmp.eq.s32.totalorder %s18, 1
      %p155 = por %p153, %p154
      %p156 = scmp.ne.s32.totalorder %s147, %s148
      %p157 = scmp.eq.s32.totalorder %s18, 0
      %p158 = por %p156, %p157
      %p159 = scmp.ne.s32.totalorder %s147, %s148
      %p160 = scmp.eq.s32.totalorder %s19, 1
      %p161 = por %p159, %p160
      %p163 = scmp.ne.s32.totalorder %s148, %s162
      %p164 = scmp.eq.s32.totalorder %s19, 0
      %p165 = por %p163, %p164
      %s167 = sadd.s32 %s166, 1
      %p170 = scmp.eq.s32.totalorder %s13, 1
      %p171 = scmp.ne.s32.totalorder %s166, %s168
      %p172 = scmp.eq.s32.totalorder %s13, 0
      %p173 = por %p171, %p172
      %p174 = scmp.ne.s32.totalorder %s166, %s168
      %p175 = scmp.eq.s32.totalorder %s18, 1
      %p176 = por %p174, %p175
      %p177 = scmp.ne.s32.totalorder %s168, %s169
      %p178 = scmp.eq.s32.totalorder %s18, 0
      %p179 = por %p177, %p178
      %p180 = scmp.ne.s32.totalorder %s168, %s169
      %p181 = scmp.eq.s32.totalorder %s19, 1
      %p182 = por %p180, %p181
      %p184 = scmp.ne.s32.totalorder %s169, %s183
      %p185 = scmp.eq.s32.totalorder %s19, 0
      %p186 = por %p184, %p185
      %p187 = scmp.le.s32.totalorder 1, %s13
      %p188 = scmp.lt.s32.totalorder %s13, 3
      %p189 = pnand %p187, %p188
      %p190 = pneg %p189
      // Predicated region
      $region9: #{network_forward.1} parent=5 // pred_check
        _
      $region10: #{network_forward.1} parent=5 // pred_check_branch
        %192 = sbr.rel (%p189) target = $region12
      $region11: #{network_forward.1} parent=5 // pred_region
        %s193 = ssub.s32 %s13, 1
        // Predicated region
        $region13: #{network_forward.1} parent=11 // pred_check
          %p194 = pneg %p74
        $region14: #{network_forward.1} parent=11 // pred_check_branch
          %196 = sbr.rel (%p194) target = $region16
        $region15: #{network_forward.1} parent=11 // pred_region
          _
        $region16: #{network_forward.1} parent=11 // pred_fallthru
          _
        // Predicated region
        $region17: #{network_forward.1} parent=11 // pred_check
          %p197 = pneg %p95
        $region18: #{network_forward.1} parent=11 // pred_check_branch
          %199 = sbr.rel (%p197) target = $region20
        $region19: #{network_forward.1} parent=11 // pred_region
          _
        $region20: #{network_forward.1} parent=11 // pred_fallthru
          _
        // Predicated region
        $region21: #{network_forward.1} parent=11 // pred_check
          %p200 = pneg %p116
        $region22: #{network_forward.1} parent=11 // pred_check_branch
          %202 = sbr.rel (%p200) target = $region24
        $region23: #{network_forward.1} parent=11 // pred_region
          _
        $region24: #{network_forward.1} parent=11 // pred_fallthru
          _
        // Predicated region
        $region25: #{network_forward.1} parent=11 // pred_check
          %p203 = pneg %p137
        $region26: #{network_forward.1} parent=11 // pred_check_branch
          %205 = sbr.rel (%p203) target = $region28
        $region27: #{network_forward.1} parent=11 // pred_region
          _
        $region28: #{network_forward.1} parent=11 // pred_fallthru
          _
        // Predicated region
        $region29: #{network_forward.1} parent=11 // pred_check
          %p206 = pneg %p158
        $region30: #{network_forward.1} parent=11 // pred_check_branch
          %208 = sbr.rel (%p206) target = $region32
        $region31: #{network_forward.1} parent=11 // pred_region
          _
        $region32: #{network_forward.1} parent=11 // pred_fallthru
          _
      $region12: #{network_forward.1} parent=5 // pred_fallthru
        _
      %p209 = scmp.lt.s32.totalorder %s13, 2
      // Predicated region
      $region33: #{network_forward.1} parent=5 // pred_check
        %p210 = pneg %p209
      $region34: #{network_forward.1} parent=5 // pred_check_branch
        %212 = sbr.rel (%p210) target = $region36
      $region35: #{network_forward.1} parent=5 // pred_region
        // Predicated region
        $region37: #{network_forward.1} parent=35 // pred_check
          %p213 = pneg %p47
        $region38: #{network_forward.1} parent=35 // pred_check_branch
          %215 = sbr.rel (%p213) target = $region40
        $region39: #{network_forward.1} parent=35 // pred_region
          %s216 = smul.u32 32, %s21
          %p217 = scmp.lt.s32.totalorder %s20, 1
          %s218 = scalar_select %p217, %s20, 1
          %p219 = scmp.lt.s32.totalorder %s216, 31
          %s220 = scalar_select %p219, %s216, 31
          %s221 = smul.addr %s218, 32
          %s222 = sadd.s32 %s220, %s221
          %s223 = smul.addr %s222, 4
          %s224 = scalar_lea.vmem %s0, %s223
          %s225 = smul.u32 32, %s21
        $region40: #{network_forward.1} parent=35 // pred_fallthru
          _
      $region36: #{network_forward.1} parent=5 // pred_fallthru
        _
      %p226 = scmp.le.s32.totalorder 1, %s13
      %p227 = scmp.lt.s32.totalorder %s13, 3
      %p228 = pnand %p226, %p227
      %p229 = pneg %p228
      // Predicated region
      $region41: #{network_forward.1} parent=5 // pred_check
        _
      $region42: #{network_forward.1} parent=5 // pred_check_branch
        %231 = sbr.rel (%p228) target = $region44
      $region43: #{network_forward.1} parent=5 // pred_region
        %s232 = ssub.s32 %s13, 1
        %s233 = smul.u32 32, %s23
        %p234 = scmp.lt.s32.totalorder %s22, 1
        %s235 = scalar_select %p234, %s22, 1
        %p236 = scmp.lt.s32.totalorder %s233, 31
        %s237 = scalar_select %p236, %s233, 31
        %s238 = smul.addr %s235, 32
        %s239 = sadd.s32 %s237, %s238
        %s240 = smul.addr %s239, 4
        %s241 = scalar_lea.vmem %s0, %s240
        %p242 = pneg %p53
        %p243 = pneg %p50
        %p244 = pneg %p74
        %p245 = pneg %p71
        %p246 = pneg %p95
        %p247 = pneg %p92
        %p248 = pneg %p116
        %p249 = pneg %p113
        %p250 = pneg %p137
        %p251 = pneg %p134
        %p252 = pneg %p158
        %p253 = pneg %p155
        %p254 = pneg %p179
        %p255 = pneg %p176
        %s256 = smul.u32 32, %s23
        %p257 = scmp.lt.s32.totalorder %s22, 1
        %s258 = scalar_select %p257, %s22, 1
        %p259 = scmp.lt.s32.totalorder %s256, 31
        %s260 = scalar_select %p259, %s256, 31
        %s261 = smul.addr %s258, 32
        %s262 = sadd.s32 %s260, %s261
        %s263 = smul.addr %s262, 4
        %s264 = scalar_lea.vmem %s0, %s263
        %s265 = smul.u32 32, %s23
        %p267 = scmp.eq.s32.totalorder %s22, 0
        %p268 = scmp.eq.s32.totalorder %s23, 0
        %p269 = pnand %p267, %p268
        %p270 = pneg %p269
        // Predicated region
        $region45: #{network_forward.1} parent=43 // pred_check
          _
        $region46: #{network_forward.1} parent=43 // pred_check_branch
          %272 = sbr.rel (%p269) target = $region48
        $region47: #{network_forward.1} parent=43 // pred_region
          %273 = vst [vmem:[#allocation2] sm:$0x1] 0.0
          %274 = vst [vmem:[#allocation3] sm:$0x3] 0.0
        $region48: #{network_forward.1} parent=43 // pred_fallthru
          _
        %v275 = vld [vmem:[%s264] sm:$0xf]
        %v276 = vld [vmem:[%s264 + $0x4] sm:$0xf]
        %v277 = vld [vmem:[%s264 + $0x8] sm:$0xf]
        %v278 = vld [vmem:[%s264 + $0xc] sm:$0xf]
        %v279 = vld [vmem:[%s264 + $0x10] sm:$0xf]
        %v280 = vld [vmem:[%s264 + $0x14] sm:$0xf]
        %v281 = vld [vmem:[%s264 + $0x18] sm:$0xf]
        %v282 = vld [vmem:[%s264 + $0x1c] sm:$0xf]
        %v283 = vld [vmem:[%s264 + $0x20] sm:$0xf]
        %v284 = vld [vmem:[%s264 + $0x24] sm:$0xf]
        %v285 = vld [vmem:[%s264 + $0x28] sm:$0xf]
        %v286 = vld [vmem:[%s264 + $0x2c] sm:$0xf]
        %v287 = vld [vmem:[%s264 + $0x30] sm:$0xf]
        %v288 = vld [vmem:[%s264 + $0x34] sm:$0xf]
        %v289 = vld [vmem:[%s264 + $0x38] sm:$0xf]
        %v290 = vld [vmem:[%s264 + $0x3c] sm:$0xf]
        %v291 = vld [vmem:[%s264 + $0x40] sm:$0xf]
        %v292 = vld [vmem:[%s264 + $0x44] sm:$0xf]
        %v293 = vld [vmem:[%s264 + $0x48] sm:$0xf]
        %v294 = vld [vmem:[%s264 + $0x4c] sm:$0xf]
        %v295 = vld [vmem:[%s264 + $0x50] sm:$0xf]
        %v296 = vld [vmem:[%s264 + $0x54] sm:$0xf]
        %v297 = vld [vmem:[%s264 + $0x58] sm:$0xf]
        %v298 = vld [vmem:[%s264 + $0x5c] sm:$0xf]
        %v299 = vld [vmem:[%s264 + $0x60] sm:$0xf]
        %v300 = vld [vmem:[%s264 + $0x64] sm:$0xf]
        %v301 = vld [vmem:[%s264 + $0x68] sm:$0xf]
        %v302 = vld [vmem:[%s264 + $0x6c] sm:$0xf]
        %v303 = vld [vmem:[%s264 + $0x70] sm:$0xf]
        %v304 = vld [vmem:[%s264 + $0x74] sm:$0xf]
        %v305 = vld [vmem:[%s264 + $0x78] sm:$0xf]
        %v306 = vld [vmem:[%s264 + $0x7c] sm:$0xf]
        %v307 = vld [vmem:[%s1] sm:$0xf]
        %v308 = vld [vmem:[%s1 + $0x4] sm:$0xf]
        %v309 = vld [vmem:[%s1 + $0x8] sm:$0xf]
        %v310 = vld [vmem:[%s1 + $0xc] sm:$0x3]
        %v343 = vunpack.c.l.b16 %v275
        %v344 = vunpack.c.l.b16 %v276
        %v345 = vunpack.c.l.b16 %v277
        %v346 = vunpack.c.l.b16 %v278
        %v347 = vunpack.c.l.b16 %v279
        %v348 = vunpack.c.l.b16 %v280
        %v349 = vunpack.c.l.b16 %v281
        %v350 = vunpack.c.l.b16 %v282
        %v351 = vunpack.c.l.b16 %v283
        %v352 = vunpack.c.l.b16 %v284
        %v353 = vunpack.c.l.b16 %v285
        %v354 = vunpack.c.l.b16 %v286
        %v355 = vunpack.c.l.b16 %v287
        %v356 = vunpack.c.l.b16 %v288
        %v357 = vunpack.c.l.b16 %v289
        %v358 = vunpack.c.l.b16 %v290
        %v359 = vunpack.c.l.b16 %v291
        %v360 = vunpack.c.l.b16 %v292
        %v361 = vunpack.c.l.b16 %v293
        %v362 = vunpack.c.l.b16 %v294
        %v363 = vunpack.c.l.b16 %v295
        %v364 = vunpack.c.l.b16 %v296
        %v365 = vunpack.c.l.b16 %v297
        %v366 = vunpack.c.l.b16 %v298
        %v367 = vunpack.c.l.b16 %v299
        %v368 = vunpack.c.l.b16 %v300
        %v369 = vunpack.c.l.b16 %v301
        %v370 = vunpack.c.l.b16 %v302
        %v371 = vunpack.c.l.b16 %v303
        %v372 = vunpack.c.l.b16 %v304
        %v373 = vunpack.c.l.b16 %v305
        %v374 = vunpack.c.l.b16 %v306
        %v375 = vpack.c.b16 %v344, %v343
        %v376 = vpack.c.b16 %v346, %v345
        %v377 = vpack.c.b16 %v348, %v347
        %v378 = vpack.c.b16 %v350, %v349
        %v379 = vpack.c.b16 %v352, %v351
        %v380 = vpack.c.b16 %v354, %v353
        %v381 = vpack.c.b16 %v356, %v355
        %v382 = vpack.c.b16 %v358, %v357
        %v383 = vpack.c.b16 %v360, %v359
        %v384 = vpack.c.b16 %v362, %v361
        %v385 = vpack.c.b16 %v364, %v363
        %v386 = vpack.c.b16 %v366, %v365
        %v387 = vpack.c.b16 %v368, %v367
        %v388 = vpack.c.b16 %v370, %v369
        %v389 = vpack.c.b16 %v372, %v371
        %v390 = vpack.c.b16 %v374, %v373
        %v395 = vunpack.c.l.b16 %v307
        %v396 = vunpack.c.l.b16 %v308
        %v397 = vunpack.c.l.b16 %v309
        %v398 = vunpack.c.l.b16 %v310
        %v399 = vpack.c.b16 %v396, %v395
        %v400 = vpack.c.b16 %v398, %v397
        %vm402 = vcmask 220160
        %v404 = vsel %vm402, %v375, 0
        %v407 = vsel %vm402, %v376, 0
        %v410 = vsel %vm402, %v377, 0
        %v413 = vsel %vm402, %v378, 0
        %v416 = vsel %vm402, %v379, 0
        %v419 = vsel %vm402, %v380, 0
        %v422 = vsel %vm402, %v381, 0
        %v425 = vsel %vm402, %v382, 0
        %v428 = vsel %vm402, %v383, 0
        %v431 = vsel %vm402, %v384, 0
        %v434 = vsel %vm402, %v385, 0
        %v437 = vsel %vm402, %v386, 0
        %v440 = vsel %vm402, %v387, 0
        %v443 = vsel %vm402, %v388, 0
        %v446 = vsel %vm402, %v389, 0
        %v449 = vsel %vm402, %v390, 0
        %vm451 = vcmask 1044480
        %vm452 = vcmask 1045504
        %v453 = vsel %vm451, 4294967295, 65535
        %v454 = vsel %vm452, %v453, 0
        %v456 = vand.u32 %v400, %v454
        %458 = vmatpush.bf16.msra.mxu0 0
        %459 = vmatpush.bf16.msra.mxu0 0
        %460 = vmatpush.bf16.msra.mxu0 0
        %461 = vmatpush.bf16.msra.mxu0 0
        %462 = vmatpush.bf16.msra.mxu0 0
        %463 = vmatpush.bf16.msra.mxu0 0
        %464 = vmatpush.bf16.msra.mxu0 %v456
        %465 = vmatpush.bf16.msra.mxu0 %v399
        %466 = vmatmul.bf16.gmra.mxu0 %v404
        %v467 = vpop.f32.mrf.mxu0
        %v468 = vadd.f32 0.0, %v467
        %v469 = vpop.f32.mrf.mxu0
        %v470 = vadd.f32 0.0, %v469
        %471 = vmatmul.bf16.gmra.mxu0 %v407
        %v472 = vpop.f32.mrf.mxu0
        %v473 = vadd.f32 0.0, %v472
        %v474 = vpop.f32.mrf.mxu0
        %v475 = vadd.f32 0.0, %v474
        %476 = vmatmul.bf16.gmra.mxu0 %v410
        %v477 = vpop.f32.mrf.mxu0
        %v478 = vadd.f32 0.0, %v477
        %v479 = vpop.f32.mrf.mxu0
        %v480 = vadd.f32 0.0, %v479
        %481 = vmatmul.bf16.gmra.mxu0 %v413
        %v482 = vpop.f32.mrf.mxu0
        %v483 = vadd.f32 0.0, %v482
        %v484 = vpop.f32.mrf.mxu0
        %v485 = vadd.f32 0.0, %v484
        %486 = vmatmul.bf16.gmra.mxu0 %v416
        %v487 = vpop.f32.mrf.mxu0
        %v488 = vadd.f32 0.0, %v487
        %v489 = vpop.f32.mrf.mxu0
        %v490 = vadd.f32 0.0, %v489
        %491 = vmatmul.bf16.gmra.mxu0 %v419
        %v492 = vpop.f32.mrf.mxu0
        %v493 = vadd.f32 0.0, %v492
        %v494 = vpop.f32.mrf.mxu0
        %v495 = vadd.f32 0.0, %v494
        %496 = vmatmul.bf16.gmra.mxu0 %v422
        %v497 = vpop.f32.mrf.mxu0
        %v498 = vadd.f32 0.0, %v497
        %v499 = vpop.f32.mrf.mxu0
        %v500 = vadd.f32 0.0, %v499
        %501 = vmatmul.bf16.gmra.mxu0 %v425
        %v502 = vpop.f32.mrf.mxu0
        %v503 = vadd.f32 0.0, %v502
        %v504 = vpop.f32.mrf.mxu0
        %v505 = vadd.f32 0.0, %v504
        %506 = vmatmul.bf16.gmra.mxu0 %v428
        %v507 = vpop.f32.mrf.mxu0
        %v508 = vadd.f32 0.0, %v507
        %v509 = vpop.f32.mrf.mxu0
        %v510 = vadd.f32 0.0, %v509
        %511 = vmatmul.bf16.gmra.mxu0 %v431
        %v512 = vpop.f32.mrf.mxu0
        %v513 = vadd.f32 0.0, %v512
        %v514 = vpop.f32.mrf.mxu0
        %v515 = vadd.f32 0.0, %v514
        %516 = vmatmul.bf16.gmra.mxu0 %v434
        %v517 = vpop.f32.mrf.mxu0
        %v518 = vadd.f32 0.0, %v517
        %v519 = vpop.f32.mrf.mxu0
        %v520 = vadd.f32 0.0, %v519
        %521 = vmatmul.bf16.gmra.mxu0 %v437
        %v522 = vpop.f32.mrf.mxu0
        %v523 = vadd.f32 0.0, %v522
        %v524 = vpop.f32.mrf.mxu0
        %v525 = vadd.f32 0.0, %v524
        %526 = vmatmul.bf16.gmra.mxu0 %v440
        %v527 = vpop.f32.mrf.mxu0
        %v528 = vadd.f32 0.0, %v527
        %v529 = vpop.f32.mrf.mxu0
        %v530 = vadd.f32 0.0, %v529
        %531 = vmatmul.bf16.gmra.mxu0 %v443
        %v532 = vpop.f32.mrf.mxu0
        %v533 = vadd.f32 0.0, %v532
        %v534 = vpop.f32.mrf.mxu0
        %v535 = vadd.f32 0.0, %v534
        %536 = vmatmul.bf16.gmra.mxu0 %v446
        %v537 = vpop.f32.mrf.mxu0
        %v538 = vadd.f32 0.0, %v537
        %v539 = vpop.f32.mrf.mxu0
        %v540 = vadd.f32 0.0, %v539
        %541 = vmatmul.bf16.gmra.mxu0 %v449
        %v542 = vpop.f32.mrf.mxu0
        %v543 = vadd.f32 0.0, %v542
        %v544 = vpop.f32.mrf.mxu0
        %v545 = vadd.f32 0.0, %v544
        %546 = vdwg.mxu0
        %v547 = vadd.f32 %v468, %v470
        %v548 = vadd.f32 %v547, %v473
        %v549 = vadd.f32 %v548, %v475
        %v550 = vadd.f32 %v549, %v478
        %v551 = vadd.f32 %v550, %v480
        %v552 = vadd.f32 %v551, %v483
        %v553 = vadd.f32 %v552, %v485
        %v554 = vadd.f32 %v553, %v488
        %v555 = vadd.f32 %v554, %v490
        %v556 = vadd.f32 %v555, %v493
        %v557 = vadd.f32 %v556, %v495
        %v558 = vadd.f32 %v557, %v498
        %v559 = vadd.f32 %v558, %v500
        %v560 = vadd.f32 %v559, %v503
        %v561 = vadd.f32 %v560, %v505
        %v562 = vadd.f32 %v561, %v508
        %v563 = vadd.f32 %v562, %v510
        %v564 = vadd.f32 %v563, %v513
        %v565 = vadd.f32 %v564, %v515
        %v566 = vadd.f32 %v565, %v518
        %v567 = vadd.f32 %v566, %v520
        %v568 = vadd.f32 %v567, %v523
        %v569 = vadd.f32 %v568, %v525
        %v570 = vadd.f32 %v569, %v528
        %v571 = vadd.f32 %v570, %v530
        %v572 = vadd.f32 %v571, %v533
        %v573 = vadd.f32 %v572, %v535
        %v574 = vadd.f32 %v573, %v538
        %v575 = vadd.f32 %v574, %v540
        %v576 = vadd.f32 %v575, %v543
        %v577 = vadd.f32 %v576, %v545
        %v578 = vrot.slane %v577, 4
        %v579 = vadd.f32 %v577, %v578
        %v580 = vrot.slane %v579, 2
        %v581 = vadd.f32 %v579, %v580
        %v582 = vrot.slane %v581, 1
        %v583 = vadd.f32 %v581, %v582
        %v584 = vld [vmem:[#allocation2] sm:$0x1]
        %v585 = vmul.f32 %v468, %v468
        %v586 = vmul.f32 %v470, %v470
        %v587 = vmul.f32 %v473, %v473
        %v588 = vmul.f32 %v475, %v475
        %v589 = vmul.f32 %v478, %v478
        %v590 = vmul.f32 %v480, %v480
        %v591 = vmul.f32 %v483, %v483
        %v592 = vmul.f32 %v485, %v485
        %v593 = vmul.f32 %v488, %v488
        %v594 = vmul.f32 %v490, %v490
        %v595 = vmul.f32 %v493, %v493
        %v596 = vmul.f32 %v495, %v495
        %v597 = vmul.f32 %v498, %v498
        %v598 = vmul.f32 %v500, %v500
        %v599 = vmul.f32 %v503, %v503
        %v600 = vmul.f32 %v505, %v505
        %v601 = vmul.f32 %v508, %v508
        %v602 = vmul.f32 %v510, %v510
        %v603 = vmul.f32 %v513, %v513
        %v604 = vmul.f32 %v515, %v515
        %v605 = vmul.f32 %v518, %v518
        %v606 = vmul.f32 %v520, %v520
        %v607 = vmul.f32 %v523, %v523
        %v608 = vmul.f32 %v525, %v525
        %v609 = vmul.f32 %v528, %v528
        %v610 = vmul.f32 %v530, %v530
        %v611 = vmul.f32 %v533, %v533
        %v612 = vmul.f32 %v535, %v535
        %v613 = vmul.f32 %v538, %v538
        %v614 = vmul.f32 %v540, %v540
        %v615 = vmul.f32 %v543, %v543
        %v616 = vmul.f32 %v545, %v545
        %v617 = vadd.f32 %v585, %v586
        %v618 = vadd.f32 %v617, %v587
        %v619 = vadd.f32 %v618, %v588
        %v620 = vadd.f32 %v619, %v589
        %v621 = vadd.f32 %v620, %v590
        %v622 = vadd.f32 %v621, %v591
        %v623 = vadd.f32 %v622, %v592
        %v624 = vadd.f32 %v623, %v593
        %v625 = vadd.f32 %v624, %v594
        %v626 = vadd.f32 %v625, %v595
        %v627 = vadd.f32 %v626, %v596
        %v628 = vadd.f32 %v627, %v597
        %v629 = vadd.f32 %v628, %v598
        %v630 = vadd.f32 %v629, %v599
        %v631 = vadd.f32 %v630, %v600
        %v632 = vadd.f32 %v631, %v601
        %v633 = vadd.f32 %v632, %v602
        %v634 = vadd.f32 %v633, %v603
        %v635 = vadd.f32 %v634, %v604
        %v636 = vadd.f32 %v635, %v605
        %v637 = vadd.f32 %v636, %v606
        %v638 = vadd.f32 %v637, %v607
        %v639 = vadd.f32 %v638, %v608
        %v640 = vadd.f32 %v639, %v609
        %v641 = vadd.f32 %v640, %v610
        %v642 = vadd.f32 %v641, %v611
        %v643 = vadd.f32 %v642, %v612
        %v644 = vadd.f32 %v643, %v613
        %v645 = vadd.f32 %v644, %v614
        %v646 = vadd.f32 %v645, %v615
        %v647 = vadd.f32 %v646, %v616
        %v648 = vrot.slane %v647, 4
        %v649 = vadd.f32 %v647, %v648
        %v650 = vrot.slane %v649, 2
        %v651 = vadd.f32 %v649, %v650
        %v652 = vrot.slane %v651, 1
        %v653 = vadd.f32 %v651, %v652
        %v654 = vadd.f32 %v584, %v653
        %655 = vst [vmem:[#allocation2] sm:$0x1] %v654
        %v656 = vlaneseq
        %v657 = vshrl.u32 %v656, 7
        %v658 = vld [vmem:[#allocation3] sm:$0x3]
        %v659 = vstv %s22
        %vm660 = vcmp.eq.s32.totalorder %v657, %v659
        %v661 = vsel %vm660, %v583, 0.0
        %v662 = vadd.f32 %v658, %v661
        %663 = vst [vmem:[#allocation3] sm:$0x3] %v662
        %p664 = scmp.eq.s32.totalorder %s22, 1
        %p665 = pnand %p664, %p268
        %p666 = pneg %p665
        // Predicated region
        $region49: #{network_forward.1} parent=43 // pred_check
          _
        $region50: #{network_forward.1} parent=43 // pred_check_branch
          %668 = sbr.rel (%p665) target = $region52
        $region51: #{network_forward.1} parent=43 // pred_region
          %v669 = vld [vmem:[#allocation3] sm:$0x3]
          %vm670 = vcmask 1041408
          %v671 = vsel %vm670, %v669, 0.0
          %v672 = vrot.slane %v671, 4
          %v673 = vadd.f32 %v671, %v672
          %v674 = vrot.slane %v673, 2
          %v675 = vadd.f32 %v673, %v674
          %v676 = vrot.slane %v675, 1
          %v677 = vadd.f32 %v675, %v676
          %v678 = vmul.f32 %v677, 0.001953125
          %v679 = vld [vmem:[#allocation2] sm:$0x1]
          %v680 = vmul.f32 %v679, 0.001953125
          %v681 = vmul.f32 %v678, %v678
          %v682 = vsub.f32 %v680, %v681
          %v683 = vld [vmem:[%s2] sm:$0x1]
          %v684 = vadd.f32 %v682, 1e-05
          %v685 = vrsqrt.pop %v684
          %v686 = vmul.f32 %v685, %v684
          %v687 = vmul.f32 %v686, %v685
          %v688 = vmul.f32 0.5, %v687
          %v689 = vsub.f32 1.5, %v688
          %v690 = vmul.f32 %v685, %v689
          %vm691 = vweird.f32 %v684
          %vm692 = vweird.f32 %v685
          %vm693 = vmor %vm691, %vm692
          %v694 = vsel %vm693, %v685, %v690
          %v695 = vmul.f32 %v683, %v694
          %v696 = vld [vmem:[%s3] sm:$0x1]
          %v697 = vmul.f32 %v678, %v695
          %v698 = vsub.f32 %v696, %v697
          %v699 = vmul.f32 %v669, 0.00390625
          %v701 = vperm.slane %v695, 0
          %v703 = vmul.f32 %v699, %v701
          %v705 = vperm.slane %v698, 0
          %v707 = vadd.f32 %v703, %v705
          %v708 = vld [vmem:[%s4] sm:$0xff]
          %v709 = vld [vmem:[%s4 + $0x8] sm:$0xff]
          %v710 = vld [vmem:[%s4 + $0x10] sm:$0xff]
          %v711 = vld [vmem:[%s4 + $0x18] sm:$0xff]
          %v712 = vld [vmem:[%s4 + $0x20] sm:$0xff]
          %v713 = vld [vmem:[%s4 + $0x28] sm:$0xff]
          %v714 = vld [vmem:[%s4 + $0x30] sm:$0xff]
          %v715 = vld [vmem:[%s4 + $0x38] sm:$0xff]
          %v716 = vld [vmem:[%s4 + $0x40] sm:$0xff]
          %v717 = vld [vmem:[%s4 + $0x48] sm:$0xff]
          %v718 = vld [vmem:[%s4 + $0x50] sm:$0xff]
          %v719 = vld [vmem:[%s4 + $0x58] sm:$0xff]
          %v720 = vld [vmem:[%s4 + $0x60] sm:$0xff]
          %v721 = vld [vmem:[%s4 + $0x68] sm:$0xff]
          %v722 = vld [vmem:[%s4 + $0x70] sm:$0xff]
          %v723 = vld [vmem:[%s4 + $0x78] sm:$0xff]
          %v724 = vld [vmem:[%s5] sm:$0x1]
          %v726 = vperm.slane %v724, 0
          %728 = vmatpush.msra.mxu0 %v723
          %729 = vmatpush.msra.mxu0 %v722
          %730 = vmatpush.msra.mxu0 %v721
          %731 = vmatpush.msra.mxu0 %v720
          %732 = vmatpush.msra.mxu0 %v719
          %733 = vmatpush.msra.mxu0 %v718
          %734 = vmatpush.msra.mxu0 %v717
          %735 = vmatpush.msra.mxu0 %v716
          %736 = vmatpush.msra.mxu0 %v715
          %737 = vmatpush.msra.mxu0 %v714
          %738 = vmatpush.msra.mxu0 %v713
          %739 = vmatpush.msra.mxu0 %v712
          %740 = vmatpush.msra.mxu0 %v711
          %741 = vmatpush.msra.mxu0 %v710
          %742 = vmatpush.msra.mxu0 %v709
          %743 = vmatpush.msra.mxu0 %v708
          %744 = vmatmul.f32.gmra.mxu0 %v707
          %v745 = vpop.f32.mrf.mxu0
          %v746 = vadd.f32 %v726, %v745
          %747 = vdwg.mxu0
          %748 = vst [vmem:[#allocation4] sm:$0x3] %v746
        $region52: #{network_forward.1} parent=43 // pred_fallthru
          _
        // Predicated region
        $region53: #{network_forward.1} parent=43 // pred_check
          %p749 = pneg %p176
        $region54: #{network_forward.1} parent=43 // pred_check_branch
          %751 = sbr.rel (%p749) target = $region56
        $region55: #{network_forward.1} parent=43 // pred_region
          %753 = vsyncadd [#allocation5], 0
          %s755 = sshll.u32 [#allocation4], 4
          %s756 = int_to_ptr.vmem [resolvable:$true] %s755
          %s757 = sshll.u32 %s6, 4
          %s758 = int_to_ptr.hbm [resolvable:$true] %s757
          %760 = dma.vmem_to_hbm [thread:$0]  %s756, 32, %s758, [#allocation5]
        $region56: #{network_forward.1} parent=43 // pred_fallthru
          _
        // Predicated region
        $region57: #{network_forward.1} parent=43 // pred_check
          %p761 = pneg %p176
        $region58: #{network_forward.1} parent=43 // pred_check_branch
          %763 = sbr.rel (%p761) target = $region60
        $region59: #{network_forward.1} parent=43 // pred_region
          %765 = dma.done [#allocation5], 32
        $region60: #{network_forward.1} parent=43 // pred_fallthru
          _
      $region44: #{network_forward.1} parent=5 // pred_fallthru
        _
      %p766 = scmp.le.s32.totalorder 2, %s13
      // Predicated region
      $region61: #{network_forward.1} parent=5 // pred_check
        %p767 = pneg %p766
      $region62: #{network_forward.1} parent=5 // pred_check_branch
        %769 = sbr.rel (%p767) target = $region64
      $region63: #{network_forward.1} parent=5 // pred_region
        %s770 = ssub.s32 %s13, 2
      $region64: #{network_forward.1} parent=5 // pred_fallthru
        _
    $region6: #{network_forward.1} parent=1 // loop_footer
      %s17 = sadd.s32 1, %s13
    $region7: #{network_forward.1} parent=1 // loop_footer_branch
      %12 = sbr.rel target = $region3
    $region8: #{network_forward.1} parent=1 // loop_exit
      _
    %771 = vsyncpa [#allocation5], 1
    %s772 = scalar_lea.sflag [#allocation5], 1
    %773 = vsyncpa %s772, 1

</llo_original>
